<compile_context>
chip_gen: v6e
topology: v6e:2x2x1
jax: 0.10.0
libtpu: 0.0.40
codegen_flags: <defaults>
</compile_context>

<pallas_src>
import functools

import jax
import jax.numpy as jnp
from jax.experimental import pallas as pl
from jax.experimental.pallas import tpu as pltpu


# ----------------------------------------------------------------------------
# Kernels (separable sum-then-scale average pooling)
# ----------------------------------------------------------------------------

def _avgpool_kernel_w_lanes(x_ref, o_ref, *, K, scale):
    """Layout (NB, H, W): image width on the lane axis (wide-image path)."""
    _, Ho, Wo = o_ref.shape
    x = x_ref[...].astype(jnp.float32)
    # Horizontal partial sums: (NB, H, Wo).  K is tiny -> unrolled adds.
    acc_h = x[:, :, 0:Wo]
    for j in range(1, K):
        acc_h = acc_h + x[:, :, j:j + Wo]
    # Vertical sums: (NB, Ho, Wo).
    acc = acc_h[:, 0:Ho, :]
    for i in range(1, K):
        acc = acc + acc_h[:, i:i + Ho, :]
    # Single multiply by the uniform weight value (== 1/K^2), hoisted constant.
    o_ref[...] = (acc * scale).astype(o_ref.dtype)


def _avgpool_kernel_n_lanes(x_ref, o_ref, *, K, scale):
    """Layout (H, W, NB): batch on the lane axis (small-image path).

    Window shifts become leading/sublane-axis slices; the output store is
    lane-dense whenever NB is a multiple of 128 (or equals N).
    """
    Ho, Wo, _ = o_ref.shape
    x = x_ref[...].astype(jnp.float32)
    acc_h = x[:, 0:Wo, :]
    for j in range(1, K):
        acc_h = acc_h + x[:, j:j + Wo, :]
    acc = acc_h[0:Ho, :, :]
    for i in range(1, K):
        acc = acc + acc_h[i:i + Ho, :, :]
    o_ref[...] = (acc * scale).astype(o_ref.dtype)


# ----------------------------------------------------------------------------
# Sizing helpers
# ----------------------------------------------------------------------------

def _tpu_vmem_params():
    """Return (vmem_budget_bytes, target_input_block_bytes) per generation."""
    try:
        cap = int(pltpu.get_tpu_info().vmem_capacity_bytes)
    except Exception:
        cap = 64 << 20                       # assume smallest (v7x-sized) VMEM
    if cap >= (100 << 20):                   # v5e / v6e: 128 MiB physical VMEM
        return 96 << 20, 16 << 20
    return 48 << 20, 8 << 20                 # v7x: 64 MiB physical VMEM per TC


def _per_image_vmem_bytes(H, W, K, itemsize):
    """VMEM footprint per image: double-buffered in/out blocks + f32 temps."""
    Ho, Wo = H - K + 1, W - K + 1
    return (2 * H * W * itemsize + 2 * Ho * Wo * itemsize
            + (K + 2) * H * Wo * 4)


# ----------------------------------------------------------------------------
# Wrappers
# ----------------------------------------------------------------------------

def _avgpool_w_lanes(x_sq, K, scale):
    """(N, H, W) layout, tiled over the batch; W stays on the lane axis."""
    N, H, W = x_sq.shape
    Ho, Wo = H - K + 1, W - K + 1
    isz = jnp.dtype(x_sq.dtype).itemsize
    vmem_budget, target_in = _tpu_vmem_params()
    per_img = _per_image_vmem_bytes(H, W, K, isz)

    # Images per grid step: big enough to amortize the ~0.35 us/step overhead,
    # small enough that the whole footprint fits the per-generation budget.
    nb = max(1, min(N, target_in // max(H * W * isz, 1)))
    while nb > 1 and nb * per_img > vmem_budget:
        nb = (nb + 1) // 2
    # Keep >= 2 grid blocks when possible so both TensorCores of a v7x chip get
    # work (parallel vs arbitrary is near-zero cost on single-TC v5e/v6e).
    if N >= 2 and -(-N // nb) < 2:
        nb = -(-N // 2)
    num_blocks = -(-N // nb)
    vmem_limit = int(min(max(nb * per_img + (4 << 20), 32 << 20), vmem_budget))

    # NOTE: N need not be divisible by nb.  The ragged last block reads
    # padded/garbage batch rows and its out-of-bounds output writes are
    # dropped; per-image computation is independent, so this is safe and
    # avoids any host-side pad / slice HBM round trip.
    return pl.pallas_call(
        functools.partial(_avgpool_kernel_w_lanes, K=K, scale=scale),
        out_shape=jax.ShapeDtypeStruct((N, Ho, Wo), x_sq.dtype),
        grid=(num_blocks,),
        in_specs=[pl.BlockSpec((nb, H, W), lambda n: (n, 0, 0))],
        out_specs=pl.BlockSpec((nb, Ho, Wo), lambda n: (n, 0, 0)),
        compiler_params=pltpu.CompilerParams(
            dimension_semantics=("parallel",),
            vmem_limit_bytes=vmem_limit),
    )(x_sq)


def _avgpool_n_lanes(x_sq, K, scale):
    """Small-image path: batch on the lane axis, layout (H, W, N)."""
    N, H, W = x_sq.shape
    Ho, Wo = H - K + 1, W - K + 1
    isz = jnp.dtype(x_sq.dtype).itemsize
    vmem_budget, target_in = _tpu_vmem_params()
    per_img = _per_image_vmem_bytes(H, W, K, isz)

    if N <= 128:
        nb = N                              # lane block must equal the full dim
    else:
        nb = min(N, max(1, target_in // max(H * W * isz, 1)))
        nb = max(128, (nb // 128) * 128)    # ... or be a multiple of 128
        while nb > 128 and nb * per_img > vmem_budget:
            nb -= 128
    num_blocks = -(-N // nb)
    vmem_limit = int(min(max(nb * per_img + (4 << 20), 32 << 20), vmem_budget))

    x_t = jnp.transpose(x_sq, (1, 2, 0))    # (H, W, N): batch on lanes
    out_t = pl.pallas_call(
        functools.partial(_avgpool_kernel_n_lanes, K=K, scale=scale),
        out_shape=jax.ShapeDtypeStruct((Ho, Wo, N), x_sq.dtype),
        grid=(num_blocks,),
        in_specs=[pl.BlockSpec((H, W, nb), lambda n: (0, 0, n))],
        out_specs=pl.BlockSpec((Ho, Wo, nb), lambda n: (0, 0, n)),
        compiler_params=pltpu.CompilerParams(
            dimension_semantics=("parallel",),
            vmem_limit_bytes=vmem_limit),
    )(x_t)
    return jnp.transpose(out_t, (2, 0, 1))  # back to (N, Ho, Wo)


def avg_pool2d_as_conv2d(x, weight):
    """Forward of AvgPool2dAsConv2d.

    x: (N, 1, H, W); weight: (K, K) (or (1, 1, K, K)) filled with 1/K^2.
    Returns (N, 1, H-K+1, W-K+1), matching Conv2d(1, 1, K, bias=False).
    """
    N, C, H, W = x.shape
    assert C == 1, "module is Conv2d(1, 1, ...)"
    K = int(jnp.asarray(weight).shape[-1])
    Ho, Wo = H - K + 1, W - K + 1
    assert Ho >= 1 and Wo >= 1

    # The separable sum-then-scale formulation is exact only for a uniform
    # kernel; verify host-side instead of silently assuming it, and fold the
    # scalar into the kernel as a compile-time constant (no SMEM input).
    w_host = jax.device_get(jnp.asarray(weight, jnp.float32)).reshape(-1)
    assert (w_host == w_host[0]).all(), \
        "AvgPool2dAsConv2d expects a uniform 1/K^2 weight"
    scale = float(w_host[0])

    x_sq = x.reshape(N, H, W)               # drop the singleton channel (free)
    isz = jnp.dtype(x.dtype).itemsize
    per_img = _per_image_vmem_bytes(H, W, K, isz)
    vmem_budget, _ = _tpu_vmem_params()

    # Narrow images waste lanes with W on the lane axis -> put the batch there.
    use_n_lanes = (W < 128) and (min(N, 128) * per_img <= vmem_budget)
    if use_n_lanes:
        out = _avgpool_n_lanes(x_sq, K, scale)
    else:
        out = _avgpool_w_lanes(x_sq, K, scale)
    return out.reshape(N, 1, Ho, Wo)


# ----------------------------------------------------------------------------
# Demo / self-check
# ----------------------------------------------------------------------------

if __name__ == "__main__":
    kernel_size = 2
    K = kernel_size

    # Deterministic parameter init matching the module's __init__:
    # weight.data.fill_(1.0 / (kernel_size * kernel_size)).
    weight = jnp.full((K, K), 1.0 / (K * K), dtype=jnp.float32)

    def reference(x, w):
        k = w.shape[0]
        Ho, Wo = x.shape[2] - k + 1, x.shape[3] - k + 1
        ref = jnp.zeros((x.shape[0], 1, Ho, Wo), jnp.float32)
        for i in range(k):
            for j in range(k):
                ref = ref + w[i, j] * x[:, :, i:i + Ho, j:j + Wo]
        return ref

    # Case 1: the module's toy shape — small 16x16 images (batch-on-lane path).
    x_small = jax.random.normal(jax.random.PRNGKey(0), (2, 1, 16, 16),
                                dtype=jnp.float32)
    y_small = avg_pool2d_as_conv2d(x_small, weight)
    jax.block_until_ready(y_small)
    assert y_small.shape == (2, 1, 15, 15)
    assert jnp.allclose(y_small, reference(x_small, weight), atol=1e-5), \
        "mismatch vs reference (small images)"

    # Case 2: wide images + non-dividing batch block — exercises the
    # W-on-lanes path, >=2 grid blocks, and ragged edge-block handling
    # (no host-side pad / slice).
    x_wide = jax.random.normal(jax.random.PRNGKey(1), (5, 1, 16, 128),
                               dtype=jnp.float32)
    y_wide = avg_pool2d_as_conv2d(x_wide, weight)
    jax.block_until_ready(y_wide)
    assert y_wide.shape == (5, 1, 15, 127)
    assert jnp.allclose(y_wide, reference(x_wide, weight), atol=1e-5), \
        "mismatch vs reference (wide images)"

    print("KERNEL_OK")
</pallas_src>

<mosaic_0001>
module attributes {stable_mosaic.version = 11 : i64} {
  func.func @_avgpool_kernel_n_lanes(%arg0: i32, %arg1: memref<16x16x2xf32, #tpu.memory_space<vmem>>, %arg2: memref<15x15x2xf32, #tpu.memory_space<vmem>>) attributes {dimension_semantics = [#tpu.dimension_semantics<parallel>], iteration_bounds = array<i64: 1>, scalar_prefetch = 0 : i64, scratch_operands = 0 : i64, tpu.core_type = #tpu.core_type<tc>, window_params = [{transform_indices = @transform_0, window_bounds = array<i64: 16, 16, 2>}, {transform_indices = @transform_1, window_bounds = array<i64: 15, 15, 2>}]} {
    %c0 = arith.constant 0 : index
    %c0_0 = arith.constant 0 : index
    %c0_1 = arith.constant 0 : index
    %0 = vector.load %arg1[%c0, %c0_0, %c0_1] : memref<16x16x2xf32, #tpu.memory_space<vmem>>, vector<16x16x2xf32>
    %1 = vector.extract_strided_slice %0 {offsets = [0, 0, 0], sizes = [16, 15, 2], strides = [1, 1, 1]} : vector<16x16x2xf32> to vector<16x15x2xf32>
    %2 = vector.extract_strided_slice %0 {offsets = [0, 1, 0], sizes = [16, 15, 2], strides = [1, 1, 1]} : vector<16x16x2xf32> to vector<16x15x2xf32>
    %3 = arith.addf %1, %2 : vector<16x15x2xf32>
    %4 = vector.extract_strided_slice %3 {offsets = [0, 0, 0], sizes = [15, 15, 2], strides = [1, 1, 1]} : vector<16x15x2xf32> to vector<15x15x2xf32>
    %5 = vector.extract_strided_slice %3 {offsets = [1, 0, 0], sizes = [15, 15, 2], strides = [1, 1, 1]} : vector<16x15x2xf32> to vector<15x15x2xf32>
    %6 = arith.addf %4, %5 : vector<15x15x2xf32>
    %cst = arith.constant 2.500000e-01 : f32
    %7 = vector.broadcast %cst : f32 to vector<15x15x2xf32>
    %8 = arith.mulf %6, %7 : vector<15x15x2xf32>
    %c0_2 = arith.constant 0 : index
    %c0_3 = arith.constant 0 : index
    %c0_4 = arith.constant 0 : index
    %9 = vector.load %arg2[%c0_2, %c0_3, %c0_4] : memref<15x15x2xf32, #tpu.memory_space<vmem>>, vector<15x15x2xf32>
    tpu.vector_store %arg2[%c0_2, %c0_3, %c0_4], %8 {strides = array<i32>} : memref<15x15x2xf32, #tpu.memory_space<vmem>>, vector<15x15x2xf32>,
    return
  }
  func.func @transform_0(%arg0: i32) -> (i32, i32, i32) {
    %c0_i32 = arith.constant 0 : i32
    %c0_i32_0 = arith.constant 0 : i32
    %c0_i32_1 = arith.constant 0 : i32
    return %c0_i32, %c0_i32_0, %arg0 : i32, i32, i32
  }
  func.func @transform_1(%arg0: i32) -> (i32, i32, i32) {
    %c0_i32 = arith.constant 0 : i32
    %c0_i32_0 = arith.constant 0 : i32
    %c0_i32_1 = arith.constant 0 : i32
    return %c0_i32, %c0_i32_0, %arg0 : i32, i32, i32
  }
}

</mosaic_0001>

<llo_original>
// kernel: tpu_custom_call.1
$region0: #{tpu_custom_call.1}
  #allocation0 [shape = 'u32[]', space=smem, size = 0x4, offset = 0x4, fixed_abs, tag = 'smem constant byte address 0x4 - core index']
  #allocation1 [shape = 'u32[144,128]{1,0:T(1,128)}', space=vmem, size = 0x12000, scoped, tag = 'internal scratch']
  %s0 = inlined_call_operand.vmem [shape: f32[16,16,2], index: 0, kind: input, shape index: {}]
  %s1 = inlined_call_operand.vmem [shape: f32[15,15,2], index: 1, kind: output, shape index: {}]
  %s2 = sld [smem:[#allocation0]]
  $region14: #{tpu_custom_call.1} parent=0
    _
  %s4 = ssub.s32 1, %s2
  %s5 = scalar_select 0, %s4, %s2
  // Predicated region
  $region2: #{tpu_custom_call.1} parent=0 // pred_check
    _
  $region3: #{tpu_custom_call.1} parent=0 // pred_check_branch
    %7 = sbr.rel (0) target = $region5
  $region4: #{tpu_custom_call.1} parent=0 // pred_region
    _
  $region5: #{tpu_custom_call.1} parent=0 // pred_fallthru
    _
  %v8 = vld [vmem:[%s0] sm:$0xff]
  %v9 = vld [vmem:[%s0 + $0x8] sm:$0xff]
  %v10 = vld [vmem:[%s0 + $0x10] sm:$0xff]
  %v11 = vld [vmem:[%s0 + $0x18] sm:$0xff]
  %v12 = vld [vmem:[%s0 + $0x20] sm:$0xff]
  %v13 = vld [vmem:[%s0 + $0x28] sm:$0xff]
  %v14 = vld [vmem:[%s0 + $0x30] sm:$0xff]
  %v15 = vld [vmem:[%s0 + $0x38] sm:$0xff]
  %v16 = vld [vmem:[%s0 + $0x40] sm:$0xff]
  %v17 = vld [vmem:[%s0 + $0x48] sm:$0xff]
  %v18 = vld [vmem:[%s0 + $0x50] sm:$0xff]
  %v19 = vld [vmem:[%s0 + $0x58] sm:$0xff]
  %v20 = vld [vmem:[%s0 + $0x60] sm:$0xff]
  %v21 = vld [vmem:[%s0 + $0x68] sm:$0xff]
  %v22 = vld [vmem:[%s0 + $0x70] sm:$0xff]
  %v23 = vld [vmem:[%s0 + $0x78] sm:$0xff]
  %v24 = vld [vmem:[%s0 + $0x80] sm:$0xff]
  %v25 = vld [vmem:[%s0 + $0x88] sm:$0xff]
  %v26 = vld [vmem:[%s0 + $0x90] sm:$0xff]
  %v27 = vld [vmem:[%s0 + $0x98] sm:$0xff]
  %v28 = vld [vmem:[%s0 + $0xa0] sm:$0xff]
  %v29 = vld [vmem:[%s0 + $0xa8] sm:$0xff]
  %v30 = vld [vmem:[%s0 + $0xb0] sm:$0xff]
  %v31 = vld [vmem:[%s0 + $0xb8] sm:$0xff]
  %v32 = vld [vmem:[%s0 + $0xc0] sm:$0xff]
  %v33 = vld [vmem:[%s0 + $0xc8] sm:$0xff]
  %v34 = vld [vmem:[%s0 + $0xd0] sm:$0xff]
  %v35 = vld [vmem:[%s0 + $0xd8] sm:$0xff]
  %v36 = vld [vmem:[%s0 + $0xe0] sm:$0xff]
  %v37 = vld [vmem:[%s0 + $0xe8] sm:$0xff]
  %v38 = vld [vmem:[%s0 + $0xf0] sm:$0xff]
  %v39 = vld [vmem:[%s0 + $0xf8] sm:$0xff]
  %vm72 = vcmask 1046528
  %v73 = vrot.slane %v8, 1
  %v74 = vrot.slane %v9, 1
  %v75 = vsel %vm72, %v73, %v74
  %v76 = vrot.slane %v10, 1
  %v77 = vrot.slane %v11, 1
  %v78 = vsel %vm72, %v76, %v77
  %v79 = vrot.slane %v12, 1
  %v80 = vrot.slane %v13, 1
  %v81 = vsel %vm72, %v79, %v80
  %v82 = vrot.slane %v14, 1
  %v83 = vrot.slane %v15, 1
  %v84 = vsel %vm72, %v82, %v83
  %v85 = vrot.slane %v16, 1
  %v86 = vrot.slane %v17, 1
  %v87 = vsel %vm72, %v85, %v86
  %v88 = vrot.slane %v18, 1
  %v89 = vrot.slane %v19, 1
  %v90 = vsel %vm72, %v88, %v89
  %v91 = vrot.slane %v20, 1
  %v92 = vrot.slane %v21, 1
  %v93 = vsel %vm72, %v91, %v92
  %v94 = vrot.slane %v22, 1
  %v95 = vrot.slane %v23, 1
  %v96 = vsel %vm72, %v94, %v95
  %v97 = vrot.slane %v24, 1
  %v98 = vrot.slane %v25, 1
  %v99 = vsel %vm72, %v97, %v98
  %v100 = vrot.slane %v26, 1
  %v101 = vrot.slane %v27, 1
  %v102 = vsel %vm72, %v100, %v101
  %v103 = vrot.slane %v28, 1
  %v104 = vrot.slane %v29, 1
  %v105 = vsel %vm72, %v103, %v104
  %v106 = vrot.slane %v30, 1
  %v107 = vrot.slane %v31, 1
  %v108 = vsel %vm72, %v106, %v107
  %v109 = vrot.slane %v32, 1
  %v110 = vrot.slane %v33, 1
  %v111 = vsel %vm72, %v109, %v110
  %v112 = vrot.slane %v34, 1
  %v113 = vrot.slane %v35, 1
  %v114 = vsel %vm72, %v112, %v113
  %v115 = vrot.slane %v36, 1
  %v116 = vrot.slane %v37, 1
  %v117 = vsel %vm72, %v115, %v116
  %v118 = vrot.slane %v38, 1
  %v119 = vrot.slane %v39, 1
  %v120 = vsel %vm72, %v118, %v119
  %v153 = vadd.f32 %v8, %v75
  %v154 = vadd.f32 %v9, %v74
  %v155 = vadd.f32 %v10, %v78
  %v156 = vadd.f32 %v11, %v77
  %v157 = vadd.f32 %v12, %v81
  %v158 = vadd.f32 %v13, %v80
  %v159 = vadd.f32 %v14, %v84
  %v160 = vadd.f32 %v15, %v83
  %v161 = vadd.f32 %v16, %v87
  %v162 = vadd.f32 %v17, %v86
  %v163 = vadd.f32 %v18, %v90
  %v164 = vadd.f32 %v19, %v89
  %v165 = vadd.f32 %v20, %v93
  %v166 = vadd.f32 %v21, %v92
  %v167 = vadd.f32 %v22, %v96
  %v168 = vadd.f32 %v23, %v95
  %v169 = vadd.f32 %v24, %v99
  %v170 = vadd.f32 %v25, %v98
  %v171 = vadd.f32 %v26, %v102
  %v172 = vadd.f32 %v27, %v101
  %v173 = vadd.f32 %v28, %v105
  %v174 = vadd.f32 %v29, %v104
  %v175 = vadd.f32 %v30, %v108
  %v176 = vadd.f32 %v31, %v107
  %v177 = vadd.f32 %v32, %v111
  %v178 = vadd.f32 %v33, %v110
  %v179 = vadd.f32 %v34, %v114
  %v180 = vadd.f32 %v35, %v113
  %v181 = vadd.f32 %v36, %v117
  %v182 = vadd.f32 %v37, %v116
  %v183 = vadd.f32 %v38, %v120
  %v184 = vadd.f32 %v39, %v119
  %v185 = vadd.f32 %v153, %v155
  %v186 = vadd.f32 %v154, %v156
  %v187 = vadd.f32 %v155, %v157
  %v188 = vadd.f32 %v156, %v158
  %v189 = vadd.f32 %v157, %v159
  %v190 = vadd.f32 %v158, %v160
  %v191 = vadd.f32 %v159, %v161
  %v192 = vadd.f32 %v160, %v162
  %v193 = vadd.f32 %v161, %v163
  %v194 = vadd.f32 %v162, %v164
  %v195 = vadd.f32 %v163, %v165
  %v196 = vadd.f32 %v164, %v166
  %v197 = vadd.f32 %v165, %v167
  %v198 = vadd.f32 %v166, %v168
  %v199 = vadd.f32 %v167, %v169
  %v200 = vadd.f32 %v168, %v170
  %v201 = vadd.f32 %v169, %v171
  %v202 = vadd.f32 %v170, %v172
  %v203 = vadd.f32 %v171, %v173
  %v204 = vadd.f32 %v172, %v174
  %v205 = vadd.f32 %v173, %v175
  %v206 = vadd.f32 %v174, %v176
  %v207 = vadd.f32 %v175, %v177
  %v208 = vadd.f32 %v176, %v178
  %v209 = vadd.f32 %v177, %v179
  %v210 = vadd.f32 %v178, %v180
  %v211 = vadd.f32 %v179, %v181
  %v212 = vadd.f32 %v180, %v182
  %v213 = vadd.f32 %v181, %v183
  %v214 = vadd.f32 %v182, %v184
  %v215 = vmul.f32 %v185, 0.25
  %v216 = vmul.f32 %v186, 0.25
  %v217 = vmul.f32 %v187, 0.25
  %v218 = vmul.f32 %v188, 0.25
  %v219 = vmul.f32 %v189, 0.25
  %v220 = vmul.f32 %v190, 0.25
  %v221 = vmul.f32 %v191, 0.25
  %v222 = vmul.f32 %v192, 0.25
  %v223 = vmul.f32 %v193, 0.25
  %v224 = vmul.f32 %v194, 0.25
  %v225 = vmul.f32 %v195, 0.25
  %v226 = vmul.f32 %v196, 0.25
  %v227 = vmul.f32 %v197, 0.25
  %v228 = vmul.f32 %v198, 0.25
  %v229 = vmul.f32 %v199, 0.25
  %v230 = vmul.f32 %v200, 0.25
  %v231 = vmul.f32 %v201, 0.25
  %v232 = vmul.f32 %v202, 0.25
  %v233 = vmul.f32 %v203, 0.25
  %v234 = vmul.f32 %v204, 0.25
  %v235 = vmul.f32 %v205, 0.25
  %v236 = vmul.f32 %v206, 0.25
  %v237 = vmul.f32 %v207, 0.25
  %v238 = vmul.f32 %v208, 0.25
  %v239 = vmul.f32 %v209, 0.25
  %v240 = vmul.f32 %v210, 0.25
  %v241 = vmul.f32 %v211, 0.25
  %v242 = vmul.f32 %v212, 0.25
  %v243 = vmul.f32 %v213, 0.25
  %v244 = vmul.f32 %v214, 0.25
  %vm245 = vcmask 15360
  %246 = vst.msk [vmem:[%s1] sm:$0xff] %vm245, %v215
  %vm247 = vcmask 14336
  %248 = vst.msk [vmem:[%s1 + $0x8] sm:$0x7f] %vm247, %v216
  %249 = vst.msk [vmem:[%s1 + $0x10] sm:$0xff] %vm245, %v217
  %250 = vst.msk [vmem:[%s1 + $0x18] sm:$0x7f] %vm247, %v218
  %251 = vst.msk [vmem:[%s1 + $0x20] sm:$0xff] %vm245, %v219
  %252 = vst.msk [vmem:[%s1 + $0x28] sm:$0x7f] %vm247, %v220
  %253 = vst.msk [vmem:[%s1 + $0x30] sm:$0xff] %vm245, %v221
  %254 = vst.msk [vmem:[%s1 + $0x38] sm:$0x7f] %vm247, %v222
  %255 = vst.msk [vmem:[%s1 + $0x40] sm:$0xff] %vm245, %v223
  %256 = vst.msk [vmem:[%s1 + $0x48] sm:$0x7f] %vm247, %v224
  %257 = vst.msk [vmem:[%s1 + $0x50] sm:$0xff] %vm245, %v225
  %258 = vst.msk [vmem:[%s1 + $0x58] sm:$0x7f] %vm247, %v226
  %259 = vst.msk [vmem:[%s1 + $0x60] sm:$0xff] %vm245, %v227
  %260 = vst.msk [vmem:[%s1 + $0x68] sm:$0x7f] %vm247, %v228
  %261 = vst.msk [vmem:[%s1 + $0x70] sm:$0xff] %vm245, %v229
  %262 = vst.msk [vmem:[%s1 + $0x78] sm:$0x7f] %vm247, %v230
  %263 = vst.msk [vmem:[%s1 + $0x80] sm:$0xff] %vm245, %v231
  %264 = vst.msk [vmem:[%s1 + $0x88] sm:$0x7f] %vm247, %v232
  %265 = vst.msk [vmem:[%s1 + $0x90] sm:$0xff] %vm245, %v233
  %266 = vst.msk [vmem:[%s1 + $0x98] sm:$0x7f] %vm247, %v234
  %267 = vst.msk [vmem:[%s1 + $0xa0] sm:$0xff] %vm245, %v235
  %268 = vst.msk [vmem:[%s1 + $0xa8] sm:$0x7f] %vm247, %v236
  %269 = vst.msk [vmem:[%s1 + $0xb0] sm:$0xff] %vm245, %v237
  %270 = vst.msk [vmem:[%s1 + $0xb8] sm:$0x7f] %vm247, %v238
  %271 = vst.msk [vmem:[%s1 + $0xc0] sm:$0xff] %vm245, %v239
  %272 = vst.msk [vmem:[%s1 + $0xc8] sm:$0x7f] %vm247, %v240
  %273 = vst.msk [vmem:[%s1 + $0xd0] sm:$0xff] %vm245, %v241
  %274 = vst.msk [vmem:[%s1 + $0xd8] sm:$0x7f] %vm247, %v242
  %275 = vst.msk [vmem:[%s1 + $0xe0] sm:$0xff] %vm245, %v243
  %276 = vst.msk [vmem:[%s1 + $0xe8] sm:$0x7f] %vm247, %v244
  // Predicated region
  $region6: #{tpu_custom_call.1} parent=0 // pred_check
    _
  $region7: #{tpu_custom_call.1} parent=0 // pred_check_branch
    %278 = sbr.rel (0) target = $region9
  $region8: #{tpu_custom_call.1} parent=0 // pred_region
    _
  $region9: #{tpu_custom_call.1} parent=0 // pred_fallthru
    _
  // Predicated region
  $region10: #{tpu_custom_call.1} parent=0 // pred_check
    _
  $region11: #{tpu_custom_call.1} parent=0 // pred_check_branch
    %280 = sbr.rel (0) target = $region13
  $region12: #{tpu_custom_call.1} parent=0 // pred_region
    _
  $region13: #{tpu_custom_call.1} parent=0 // pred_fallthru
    _

</llo_original>
